<compile_context>
chip_gen: v6e
topology: v6e:2x2x1
jax: 0.10.0
libtpu: 0.0.40
codegen_flags: <defaults>
</compile_context>

<pallas_src>
import functools

import numpy as np
import jax
import jax.numpy as jnp
from jax.experimental import pallas as pl
from jax.experimental.pallas import tpu as pltpu


def _vote_kernel(layer_meta, reg_meta, pts_ref, slab_ref, pts_out_ref, ctr_out_ref):
    """layer_meta: ((w_row0, c_in, c_out, shift_row0), ...) static ints.
    reg_meta: (w_row0, c_in, c_out, bias_row0) static ints.
    """
    mm_dtype = slab_ref.dtype                      # matmul operand dtype (f32 or bf16)
    h = pts_ref[...]                               # (TILE_N, C_in)
    for (w_r0, c_in, c_out, t_r0) in layer_meta:
        w = slab_ref[w_r0:w_r0 + c_in, 0:c_out]    # BN scale already folded into W
        t = slab_ref[t_r0:t_r0 + 1, 0:c_out]       # folded conv-bias/BN shift
        h = jnp.dot(h.astype(mm_dtype), w, preferred_element_type=jnp.float32)
        h = jnp.maximum(h + t.astype(jnp.float32), 0.0)   # shift + ReLU in f32
    pts_out_ref[...] = h.astype(pts_out_ref.dtype)         # single full-width store

    # ctr_reg: Conv1d(pre_channel, 3, activation=None, bn=False)
    wr_r0, c_in_r, c_out_r, br_r0 = reg_meta
    w_reg = slab_ref[wr_r0:wr_r0 + c_in_r, 0:c_out_r]
    b_reg = slab_ref[br_r0:br_r0 + 1, 0:c_out_r]
    ctr = jnp.dot(h.astype(mm_dtype), w_reg, preferred_element_type=jnp.float32)
    ctr_out_ref[...] = (ctr + b_reg.astype(jnp.float32)).astype(ctr_out_ref.dtype)


def _pack_params(mlp_weights, reg_w, reg_b):
    """Fold BN scale into the conv weights and pack everything into one 2-D slab.

    Every segment starts on an 8-row (sublane) boundary so the in-kernel static
    slices stay tile-aligned.  Returns (slab, layer_meta, reg_meta).
    """
    width = max([int(w.shape[1]) for (w, _, _) in mlp_weights] + [int(reg_w.shape[1])])
    dtype = reg_w.dtype
    segs = []
    row = 0

    def _add(arr):
        nonlocal row
        r0 = row
        r, c = int(arr.shape[0]), int(arr.shape[1])
        r_pad = ((r + 7) // 8) * 8
        segs.append(jnp.pad(arr.astype(dtype), ((0, r_pad - r), (0, width - c))))
        row += r_pad
        return r0

    layer_meta = []
    for (w, s, t) in mlp_weights:
        w_r0 = _add(w * s)                 # (h @ W) * s == h @ (W * s)
        t_r0 = _add(t)
        layer_meta.append((w_r0, int(w.shape[0]), int(w.shape[1]), t_r0))
    wr_r0 = _add(reg_w)
    br_r0 = _add(reg_b)
    reg_meta = (wr_r0, int(reg_w.shape[0]), int(reg_w.shape[1]), br_r0)
    return jnp.concatenate(segs, axis=0), tuple(layer_meta), reg_meta


def _pick_tile_n(B, N, max_tile=2048):
    """Sublane-aligned tile; prefer exact divisors of N; keep >= 2 grid steps (v7x)."""
    tile = max(8, min(max_tile, ((N + 7) // 8) * 8))
    best = None
    t = (min(tile, N) // 8) * 8
    while t >= 8:
        if N % t == 0:
            best = t
            break
        t -= 8
    if best is None:
        best = tile                         # fall back to padding N
    if B * ((N + best - 1) // best) < 2 and best > 8:
        half = max(8, ((best // 2) // 8) * 8)
        t = half
        while t >= 8 and N % t != 0:
            t -= 8
        best = t if t >= 8 else half
    return best


def vote_layer(xyz, points, mlp_weights, reg_w, reg_b, max_range, tile_n=None):
    """xyz: [B, N, 3], points: [B, N, C_in] (channel-last).

    mlp_weights: list of (W [C_in_i, C_out_i], scale [1, C_out_i], shift [1, C_out_i])
    reg_w: [C_last, 3], reg_b: [1, 3]
    max_range: static MAX_TRANSLATE_RANGE (length-3, concrete values).
    Returns (new_xyz [B,N,3], new_points [B,N,C_last], ctr_offsets [B,N,3] f32).
    """
    B, N, C_in = points.shape
    C_last = int(mlp_weights[-1][0].shape[1]) if mlp_weights else C_in

    slab, layer_meta, reg_meta = _pack_params(mlp_weights, reg_w, reg_b)

    if tile_n is None:
        tile_n = _pick_tile_n(B, N)
    tile_n = max(8, (min(int(tile_n), ((N + 7) // 8) * 8) // 8) * 8)
    n_tiles = pl.cdiv(N, tile_n)
    N_pad = n_tiles * tile_n
    pts_in = points if N_pad == N else jnp.pad(points, ((0, 0), (0, N_pad - N), (0, 0)))

    # Explicit VMEM budget: lane-padded blocks x 2 buffers + param slab, plus headroom.
    def _blk(rows, cols, dt):
        return (((rows + 7) // 8) * 8) * (((cols + 127) // 128) * 128) * jnp.dtype(dt).itemsize
    vmem_est = 2 * (_blk(tile_n, C_in, points.dtype)
                    + _blk(tile_n, C_last, points.dtype)
                    + _blk(tile_n, 3, jnp.float32)
                    + _blk(slab.shape[0], slab.shape[1], slab.dtype))
    vmem_limit = int(min(32 * 1024 * 1024, vmem_est + 8 * 1024 * 1024))

    kernel = functools.partial(_vote_kernel, layer_meta, reg_meta)

    new_points_p, ctr_p = pl.pallas_call(
        kernel,
        out_shape=(
            jax.ShapeDtypeStruct((B, N_pad, C_last), points.dtype),
            jax.ShapeDtypeStruct((B, N_pad, 3), jnp.float32),
        ),
        grid_spec=pltpu.PrefetchScalarGridSpec(
            num_scalar_prefetch=0,
            grid=(B, n_tiles),
            in_specs=[
                pl.BlockSpec((None, tile_n, C_in), lambda b, n: (b, n, 0)),  # points
                pl.BlockSpec(slab.shape, lambda b, n: (0, 0)),               # param slab
            ],
            out_specs=[
                pl.BlockSpec((None, tile_n, C_last), lambda b, n: (b, n, 0)),  # features
                pl.BlockSpec((None, tile_n, 3), lambda b, n: (b, n, 0)),       # raw ctr
            ],
        ),
        compiler_params=pltpu.CompilerParams(
            dimension_semantics=("parallel", "parallel"),
            vmem_limit_bytes=vmem_limit),
    )(pts_in, slab)

    new_points = new_points_p if N_pad == N else new_points_p[:, :N, :]
    ctr_offsets = ctr_p if N_pad == N else ctr_p[:, :N, :]

    # Clamp + xyz add in the wrapper (3-wide elementwise; XLA fuses it).  This
    # keeps the lane-sparse xyz stream and the clamp constant out of the kernel.
    mr = jnp.asarray(np.asarray(max_range, np.float32).reshape(1, 1, 3))
    limited = jnp.where(ctr_offsets < mr, ctr_offsets, mr)
    limited = jnp.where(limited > -mr, limited, -mr)
    new_xyz = (xyz.astype(jnp.float32) + limited).astype(xyz.dtype)
    return new_xyz, new_points, ctr_offsets


def vote_layer_ref(xyz, points, mlp_weights, reg_w, reg_b, max_range):
    """Pure-JAX reference mirroring the PyTorch forward (channel-last)."""
    h = points
    for w, s, t in mlp_weights:
        h = jnp.maximum(jnp.dot(h, w) * s + t, 0.0)
    ctr = jnp.dot(h, reg_w) + reg_b
    mr = jnp.asarray(max_range, jnp.float32).reshape(1, 1, 3)
    limited = jnp.where(ctr < mr, ctr, mr)
    limited = jnp.where(limited > -mr, limited, -mr)
    return xyz + limited, h, ctr


def make_params(key, c_in, mlp_list):
    """Deterministic synthetic parameters; BN (eval) folded into scale/shift."""
    params = []
    pre = c_in
    eps = 1e-5
    for c_out in mlp_list:
        key, kw, kg, kb, km, kv = jax.random.split(key, 6)
        w = jax.random.normal(kw, (pre, c_out), jnp.float32) * (1.0 / jnp.sqrt(pre))
        gamma = 0.5 + jnp.abs(jax.random.normal(kg, (1, c_out), jnp.float32)) * 0.5
        beta = jax.random.normal(kb, (1, c_out), jnp.float32) * 0.1
        mean = jax.random.normal(km, (1, c_out), jnp.float32) * 0.1
        var = 1.0 + jnp.abs(jax.random.normal(kv, (1, c_out), jnp.float32)) * 0.1
        scale = gamma / jnp.sqrt(var + eps)
        # pt_utils.Conv1d disables the conv bias when bn=True, so only BN shift remains.
        shift = beta - mean * scale
        params.append((w, scale, shift))
        pre = c_out
    key, kw, kb = jax.random.split(key, 3)
    reg_w = jax.random.normal(kw, (pre, 3), jnp.float32) * (1.0 / jnp.sqrt(pre))
    reg_b = jax.random.normal(kb, (1, 3), jnp.float32) * 0.1
    return params, reg_w, reg_b


if __name__ == "__main__":
    B, N, C_IN = 2, 256, 32
    MLP_LIST = [64, 64]
    MAX_TRANSLATE_RANGE = [3.0, 3.0, 2.0]  # cfg.MODEL.MAX_TRANSLATE_RANGE

    key = jax.random.PRNGKey(0)
    key, kx, kp = jax.random.split(key, 3)
    xyz = jax.random.normal(kx, (B, N, 3), jnp.float32) * 10.0
    points = jax.random.normal(kp, (B, N, C_IN), jnp.float32)

    mlp_weights, reg_w, reg_b = make_params(key, C_IN, MLP_LIST)

    new_xyz, new_points, ctr_offsets = vote_layer(
        xyz, points, mlp_weights, reg_w, reg_b, MAX_TRANSLATE_RANGE)
    jax.block_until_ready((new_xyz, new_points, ctr_offsets))

    ref_xyz, ref_points, ref_ctr = vote_layer_ref(
        xyz, points, mlp_weights, reg_w, reg_b, MAX_TRANSLATE_RANGE)

    assert new_xyz.shape == (B, N, 3)
    assert new_points.shape == (B, N, MLP_LIST[-1])
    assert ctr_offsets.shape == (B, N, 3)
    assert jnp.allclose(new_xyz, ref_xyz, atol=1e-2, rtol=1e-2)
    assert jnp.allclose(new_points, ref_points, atol=1e-2, rtol=1e-2)
    assert jnp.allclose(ctr_offsets, ref_ctr, atol=1e-2, rtol=1e-2)

    print("KERNEL_OK")
</pallas_src>

<mosaic_0001>
module attributes {stable_mosaic.version = 11 : i64} {
  func.func @_vote_kernel(%arg0: i32, %arg1: i32, %arg2: memref<1x256x32xf32, #tpu.memory_space<vmem>>, %arg3: memref<184x64xf32, #tpu.memory_space<vmem>>, %arg4: memref<1x256x64xf32, #tpu.memory_space<vmem>>, %arg5: memref<1x256x3xf32, #tpu.memory_space<vmem>>) attributes {dimension_semantics = [#tpu.dimension_semantics<parallel>, #tpu.dimension_semantics<parallel>], iteration_bounds = array<i64: 2, 1>, scalar_prefetch = 0 : i64, scratch_operands = 0 : i64, tpu.core_type = #tpu.core_type<tc>, window_params = [{transform_indices = @transform_0, window_bounds = array<i64: 1, 256, 32>}, {pipeline_mode = #tpu.pipeline_mode<synchronous>, transform_indices = @transform_1, window_bounds = array<i64: 184, 64>}, {transform_indices = @transform_2, window_bounds = array<i64: 1, 256, 64>}, {transform_indices = @transform_3, window_bounds = array<i64: 1, 256, 3>}]} {
    %c0 = arith.constant 0 : index
    %c0_0 = arith.constant 0 : index
    %c0_1 = arith.constant 0 : index
    %0 = vector.load %arg2[%c0, %c0_0, %c0_1] : memref<1x256x32xf32, #tpu.memory_space<vmem>>, vector<1x256x32xf32>
    %1 = vector.shape_cast %0 : vector<1x256x32xf32> to vector<256x32xf32>
    %c0_2 = arith.constant 0 : index
    %c0_3 = arith.constant 0 : index
    %2 = vector.load %arg3[%c0_2, %c0_3] : memref<184x64xf32, #tpu.memory_space<vmem>>, vector<32x64xf32>
    %c32 = arith.constant 32 : index
    %c0_4 = arith.constant 0 : index
    %3 = vector.load %arg3[%c32, %c0_4] : memref<184x64xf32, #tpu.memory_space<vmem>>, vector<1x64xf32>
    %cst = arith.constant dense<0.000000e+00> : vector<256x64xf32>
    %4 = tpu.matmul %1, %2, %cst {dimension_numbers = #tpu.dot_dimension_numbers<[1], [0], [0], [1], [0, 0, 1, 1], [], []>} : vector<256x32xf32>, vector<32x64xf32>, vector<256x64xf32> -> vector<256x64xf32>
    %5 = vector.broadcast %3 : vector<1x64xf32> to vector<256x64xf32>
    %6 = arith.addf %4, %5 : vector<256x64xf32>
    %cst_5 = arith.constant 0.000000e+00 : f32
    %7 = vector.broadcast %cst_5 : f32 to vector<256x64xf32>
    %8 = arith.maximumf %6, %7 : vector<256x64xf32>
    %c40 = arith.constant 40 : index
    %c0_6 = arith.constant 0 : index
    %9 = vector.load %arg3[%c40, %c0_6] : memref<184x64xf32, #tpu.memory_space<vmem>>, vector<64x64xf32>
    %c104 = arith.constant 104 : index
    %c0_7 = arith.constant 0 : index
    %10 = vector.load %arg3[%c104, %c0_7] : memref<184x64xf32, #tpu.memory_space<vmem>>, vector<1x64xf32>
    %cst_8 = arith.constant dense<0.000000e+00> : vector<256x64xf32>
    %11 = tpu.matmul %8, %9, %cst_8 {dimension_numbers = #tpu.dot_dimension_numbers<[1], [0], [0], [1], [0, 0, 1, 1], [], []>} : vector<256x64xf32>, vector<64x64xf32>, vector<256x64xf32> -> vector<256x64xf32>
    %12 = vector.broadcast %10 : vector<1x64xf32> to vector<256x64xf32>
    %13 = arith.addf %11, %12 : vector<256x64xf32>
    %cst_9 = arith.constant 0.000000e+00 : f32
    %14 = vector.broadcast %cst_9 : f32 to vector<256x64xf32>
    %15 = arith.maximumf %13, %14 : vector<256x64xf32>
    %c0_10 = arith.constant 0 : index
    %c0_11 = arith.constant 0 : index
    %c0_12 = arith.constant 0 : index
    %16 = vector.load %arg4[%c0_10, %c0_11, %c0_12] : memref<1x256x64xf32, #tpu.memory_space<vmem>>, vector<1x256x64xf32>
    %17 = vector.shape_cast %16 : vector<1x256x64xf32> to vector<256x64xf32>
    %18 = vector.shape_cast %15 : vector<256x64xf32> to vector<1x256x64xf32>
    tpu.vector_store %arg4[%c0_10, %c0_11, %c0_12], %18 {strides = array<i32>} : memref<1x256x64xf32, #tpu.memory_space<vmem>>, vector<1x256x64xf32>,
    %c112 = arith.constant 112 : index
    %c0_13 = arith.constant 0 : index
    %19 = vector.load %arg3[%c112, %c0_13] : memref<184x64xf32, #tpu.memory_space<vmem>>, vector<64x3xf32>
    %c176 = arith.constant 176 : index
    %c0_14 = arith.constant 0 : index
    %20 = vector.load %arg3[%c176, %c0_14] : memref<184x64xf32, #tpu.memory_space<vmem>>, vector<1x3xf32>
    %cst_15 = arith.constant dense<0.000000e+00> : vector<256x3xf32>
    %21 = tpu.matmul %15, %19, %cst_15 {dimension_numbers = #tpu.dot_dimension_numbers<[1], [0], [0], [1], [0, 0, 1, 1], [], []>} : vector<256x64xf32>, vector<64x3xf32>, vector<256x3xf32> -> vector<256x3xf32>
    %22 = vector.broadcast %20 : vector<1x3xf32> to vector<256x3xf32>
    %23 = arith.addf %21, %22 : vector<256x3xf32>
    %c0_16 = arith.constant 0 : index
    %c0_17 = arith.constant 0 : index
    %c0_18 = arith.constant 0 : index
    %24 = vector.load %arg5[%c0_16, %c0_17, %c0_18] : memref<1x256x3xf32, #tpu.memory_space<vmem>>, vector<1x256x3xf32>
    %25 = vector.shape_cast %24 : vector<1x256x3xf32> to vector<256x3xf32>
    %26 = vector.shape_cast %23 : vector<256x3xf32> to vector<1x256x3xf32>
    tpu.vector_store %arg5[%c0_16, %c0_17, %c0_18], %26 {strides = array<i32>} : memref<1x256x3xf32, #tpu.memory_space<vmem>>, vector<1x256x3xf32>,
    return
  }
  func.func @transform_0(%arg0: i32, %arg1: i32) -> (i32, i32, i32) {
    %c0_i32 = arith.constant 0 : i32
    %c0_i32_0 = arith.constant 0 : i32
    return %arg0, %arg1, %c0_i32 : i32, i32, i32
  }
  func.func @transform_1(%arg0: i32, %arg1: i32) -> (i32, i32) {
    %c0_i32 = arith.constant 0 : i32
    %c0_i32_0 = arith.constant 0 : i32
    %c0_i32_1 = arith.constant 0 : i32
    return %c0_i32, %c0_i32_0 : i32, i32
  }
  func.func @transform_2(%arg0: i32, %arg1: i32) -> (i32, i32, i32) {
    %c0_i32 = arith.constant 0 : i32
    %c0_i32_0 = arith.constant 0 : i32
    return %arg0, %arg1, %c0_i32 : i32, i32, i32
  }
  func.func @transform_3(%arg0: i32, %arg1: i32) -> (i32, i32, i32) {
    %c0_i32 = arith.constant 0 : i32
    %c0_i32_0 = arith.constant 0 : i32
    return %arg0, %arg1, %c0_i32 : i32, i32, i32
  }
}

</mosaic_0001>

<llo_original>
// kernel: tpu_custom_call.1
$region0: #{tpu_custom_call.1}
  #allocation0 [shape = 'u32[]', space=smem, size = 0x4, offset = 0x4, fixed_abs, tag = 'smem constant byte address 0x4 - core index']
  #allocation1 [shape = 'u32[144,128]{1,0:T(1,128)}', space=vmem, size = 0x12000, scoped, tag = 'internal scratch']
  %s0 = inlined_call_operand.vmem [shape: f32[2,256,32], index: 0, kind: input, shape index: {}]
  %s1 = inlined_call_operand.vmem [shape: f32[184,64], index: 1, kind: input, shape index: {}]
  %s2 = inlined_call_operand.vmem [shape: f32[2,256,64], index: 2, kind: output, shape index: {0}]
  %s3 = inlined_call_operand.vmem [shape: f32[2,256,3], index: 3, kind: output, shape index: {1}]
  %4 = xla_tuple %s2, %s3
  %s5 = sld [smem:[#allocation0]]
  $region49: #{tpu_custom_call.1} parent=0
    _
  %s7 = ssub.s32 1, %s5
  %s8 = scalar_select 0, %s7, %s5
  loop: start=0, step=1, limit=4
  $region2: #{tpu_custom_call.1} parent=0 // loop_pre_header
    _
  $region3: #{tpu_custom_call.1} parent=0 // loop_header
    %s10 = sphi 0, %s14
    %p11 = scmp.ge.s32.totalorder %s10, 4
    %s17 = sphi 0, %s29
    %s18 = sphi 0, %s25
    %s19 = sphi 0, %s17
    %s20 = sphi 0, %s18
    %s21 = sphi 0, %s19
    %s22 = sphi 0, %s20
    %s34 = sphi 0, %s36
    %s37 = sphi 0, %s34
    %s38 = sphi 0, %s37
    %s54 = sphi 0, %s38
    %s58 = sphi 0, %s58
    %s60 = sphi 0, %s58
    %s61 = sphi 0, %s60
    %s75 = sphi 0, %s61
    %s83 = sphi 0, %s85
    %s86 = sphi 0, %s83
    %s87 = sphi 0, %s86
    %s103 = sphi 0, %s87
    %s111 = sphi 0, %s113
    %s114 = sphi 0, %s111
    %s115 = sphi 0, %s114
    %s131 = sphi 0, %s115
  $region4: #{tpu_custom_call.1} parent=0 // loop_header_branch
    %13 = sbr.rel (%p11) target = $region8
  $region5: #{tpu_custom_call.1} parent=0 // loop_body
    %s15 = ssub.s32 %s10, 1
    %s16 = ssub.s32 %s10, 2
    %s23 = sadd.s32 1, %s18
    %p24 = scmp.ge.s32.totalorder %s23, 1
    %s25 = scalar_select %p24, 0, %s23
    %s26 = sadd.s32 1, %s17
    %s27 = scalar_select %p24, %s26, %s17
    %p28 = scmp.ge.s32.totalorder %s27, 2
    %s29 = scalar_select %p28, 0, %s27
    %s30 = ssub.s32 %s17, %s29
    %s31 = ssub.s32 %s18, %s25
    %s32 = sor.u32 %s30, %s31
    %p33 = scmp.eq.s32.totalorder %s32, 0
    %s35 = sadd.s32 %s34, 1
    %s36 = scalar_select %p33, %s34, %s35
    %p39 = pneg %p33
    %p40 = scmp.eq.s32.totalorder %s10, 1
    %p41 = por %p39, %p40
    %p42 = scmp.ne.s32.totalorder %s34, %s37
    %p43 = scmp.eq.s32.totalorder %s10, 0
    %p44 = por %p42, %p43
    %p45 = scmp.ne.s32.totalorder %s34, %s37
    %p46 = scmp.eq.s32.totalorder %s15, 1
    %p47 = por %p45, %p46
    %p48 = scmp.ne.s32.totalorder %s37, %s38
    %p49 = scmp.eq.s32.totalorder %s15, 0
    %p50 = por %p48, %p49
    %p51 = scmp.ne.s32.totalorder %s37, %s38
    %p52 = scmp.eq.s32.totalorder %s16, 1
    %p53 = por %p51, %p52
    %p55 = scmp.ne.s32.totalorder %s38, %s54
    %p56 = scmp.eq.s32.totalorder %s16, 0
    %p57 = por %p55, %p56
    %s59 = sadd.s32 %s58, 1
    %p62 = scmp.eq.s32.totalorder %s10, 1
    %p63 = scmp.ne.s32.totalorder %s58, %s60
    %p64 = scmp.eq.s32.totalorder %s10, 0
    %p65 = por %p63, %p64
    %p66 = scmp.ne.s32.totalorder %s58, %s60
    %p67 = scmp.eq.s32.totalorder %s15, 1
    %p68 = por %p66, %p67
    %p69 = scmp.ne.s32.totalorder %s60, %s61
    %p70 = scmp.eq.s32.totalorder %s15, 0
    %p71 = por %p69, %p70
    %p72 = scmp.ne.s32.totalorder %s60, %s61
    %p73 = scmp.eq.s32.totalorder %s16, 1
    %p74 = por %p72, %p73
    %p76 = scmp.ne.s32.totalorder %s61, %s75
    %p77 = scmp.eq.s32.totalorder %s16, 0
    %p78 = por %p76, %p77
    %s79 = ssub.s32 %s17, %s29
    %s80 = ssub.s32 %s18, %s25
    %s81 = sor.u32 %s79, %s80
    %p82 = scmp.eq.s32.totalorder %s81, 0
    %s84 = sadd.s32 %s83, 1
    %s85 = scalar_select %p82, %s83, %s84
    %p88 = pneg %p82
    %p89 = scmp.eq.s32.totalorder %s10, 1
    %p90 = por %p88, %p89
    %p91 = scmp.ne.s32.totalorder %s83, %s86
    %p92 = scmp.eq.s32.totalorder %s10, 0
    %p93 = por %p91, %p92
    %p94 = scmp.ne.s32.totalorder %s83, %s86
    %p95 = scmp.eq.s32.totalorder %s15, 1
    %p96 = por %p94, %p95
    %p97 = scmp.ne.s32.totalorder %s86, %s87
    %p98 = scmp.eq.s32.totalorder %s15, 0
    %p99 = por %p97, %p98
    %p100 = scmp.ne.s32.totalorder %s86, %s87
    %p101 = scmp.eq.s32.totalorder %s16, 1
    %p102 = por %p100, %p101
    %p104 = scmp.ne.s32.totalorder %s87, %s103
    %p105 = scmp.eq.s32.totalorder %s16, 0
    %p106 = por %p104, %p105
    %s107 = ssub.s32 %s17, %s29
    %s108 = ssub.s32 %s18, %s25
    %s109 = sor.u32 %s107, %s108
    %p110 = scmp.eq.s32.totalorder %s109, 0
    %s112 = sadd.s32 %s111, 1
    %s113 = scalar_select %p110, %s111, %s112
    %p116 = pneg %p110
    %p117 = scmp.eq.s32.totalorder %s10, 1
    %p118 = por %p116, %p117
    %p119 = scmp.ne.s32.totalorder %s111, %s114
    %p120 = scmp.eq.s32.totalorder %s10, 0
    %p121 = por %p119, %p120
    %p122 = scmp.ne.s32.totalorder %s111, %s114
    %p123 = scmp.eq.s32.totalorder %s15, 1
    %p124 = por %p122, %p123
    %p125 = scmp.ne.s32.totalorder %s114, %s115
    %p126 = scmp.eq.s32.totalorder %s15, 0
    %p127 = por %p125, %p126
    %p128 = scmp.ne.s32.totalorder %s114, %s115
    %p129 = scmp.eq.s32.totalorder %s16, 1
    %p130 = por %p128, %p129
    %p132 = scmp.ne.s32.totalorder %s115, %s131
    %p133 = scmp.eq.s32.totalorder %s16, 0
    %p134 = por %p132, %p133
    %p135 = scmp.le.s32.totalorder 1, %s10
    %p136 = scmp.lt.s32.totalorder %s10, 3
    %p137 = pnand %p135, %p136
    %p138 = pneg %p137
    // Predicated region
    $region9: #{tpu_custom_call.1} parent=5 // pred_check
      _
    $region10: #{tpu_custom_call.1} parent=5 // pred_check_branch
      %140 = sbr.rel (%p137) target = $region12
    $region11: #{tpu_custom_call.1} parent=5 // pred_region
      %s141 = ssub.s32 %s10, 1
      // Predicated region
      $region13: #{tpu_custom_call.1} parent=11 // pred_check
        %p142 = pneg %p71
      $region14: #{tpu_custom_call.1} parent=11 // pred_check_branch
        %144 = sbr.rel (%p142) target = $region16
      $region15: #{tpu_custom_call.1} parent=11 // pred_region
        _
      $region16: #{tpu_custom_call.1} parent=11 // pred_fallthru
        _
    $region12: #{tpu_custom_call.1} parent=5 // pred_fallthru
      _
    %p145 = scmp.lt.s32.totalorder %s10, 2
    // Predicated region
    $region17: #{tpu_custom_call.1} parent=5 // pred_check
      %p146 = pneg %p145
    $region18: #{tpu_custom_call.1} parent=5 // pred_check_branch
      %148 = sbr.rel (%p146) target = $region20
    $region19: #{tpu_custom_call.1} parent=5 // pred_region
      // Predicated region
      $region21: #{tpu_custom_call.1} parent=19 // pred_check
        %p149 = pneg %p44
      $region22: #{tpu_custom_call.1} parent=19 // pred_check_branch
        %151 = sbr.rel (%p149) target = $region24
      $region23: #{tpu_custom_call.1} parent=19 // pred_region
        %s152 = smul.u32 32, %s18
        %p153 = scmp.lt.s32.totalorder %s17, 1
        %s154 = scalar_select %p153, %s17, 1
        %p155 = scmp.lt.s32.totalorder %s152, 31
        %s156 = scalar_select %p155, %s152, 31
        %s157 = smul.addr %s154, 32
        %s158 = sadd.s32 %s156, %s157
        %s159 = smul.addr %s158, 8
        %s160 = scalar_lea.vmem %s0, %s159
        %s161 = smul.u32 32, %s18
      $region24: #{tpu_custom_call.1} parent=19 // pred_fallthru
        _
    $region20: #{tpu_custom_call.1} parent=5 // pred_fallthru
      _
    %p162 = scmp.le.s32.totalorder 1, %s10
    %p163 = scmp.lt.s32.totalorder %s10, 3
    %p164 = pnand %p162, %p163
    %p165 = pneg %p164
    // Predicated region
    $region25: #{tpu_custom_call.1} parent=5 // pred_check
      _
    $region26: #{tpu_custom_call.1} parent=5 // pred_check_branch
      %167 = sbr.rel (%p164) target = $region28
    $region27: #{tpu_custom_call.1} parent=5 // pred_region
      %s168 = ssub.s32 %s10, 1
      %s169 = smul.u32 32, %s20
      %p170 = scmp.lt.s32.totalorder %s19, 1
      %s171 = scalar_select %p170, %s19, 1
      %p172 = scmp.lt.s32.totalorder %s169, 31
      %s173 = scalar_select %p172, %s169, 31
      %s174 = smul.addr %s171, 32
      %s175 = sadd.s32 %s173, %s174
      %s176 = smul.addr %s175, 8
      %s177 = scalar_lea.vmem %s0, %s176
      %p178 = pneg %p50
      %p179 = pneg %p47
      %p180 = pneg %p71
      %p181 = pneg %p68
      %p182 = pneg %p99
      %p183 = pneg %p96
      %s184 = smul.u32 32, %s20
      %p185 = scmp.lt.s32.totalorder %s19, 1
      %s186 = scalar_select %p185, %s19, 1
      %p187 = scmp.lt.s32.totalorder %s184, 31
      %s188 = scalar_select %p187, %s184, 31
      %s189 = smul.addr %s186, 32
      %s190 = sadd.s32 %s188, %s189
      %s191 = smul.addr %s190, 8
      %s192 = scalar_lea.vmem %s2, %s191
      %p193 = pneg %p127
      %p194 = pneg %p124
      %s195 = smul.u32 32, %s20
      %p196 = scmp.lt.s32.totalorder %s19, 1
      %s197 = scalar_select %p196, %s19, 1
      %p198 = scmp.lt.s32.totalorder %s195, 31
      %s199 = scalar_select %p198, %s195, 31
      %s200 = smul.addr %s197, 32
      %s201 = sadd.s32 %s199, %s200
      %s202 = smul.addr %s201, 8
      %s203 = scalar_lea.vmem %s3, %s202
      %s204 = smul.u32 32, %s20
      %p205 = scmp.lt.s32.totalorder %s19, 1
      %s206 = scalar_select %p205, %s19, 1
      %p207 = scmp.lt.s32.totalorder %s204, 31
      %s208 = scalar_select %p207, %s204, 31
      %s209 = smul.addr %s206, 32
      %s210 = sadd.s32 %s208, %s209
      %s211 = smul.addr %s210, 8
      %s212 = scalar_lea.vmem %s0, %s211
      %s213 = smul.u32 32, %s20
      %s214 = smul.u32 32, %s20
      %p215 = scmp.lt.s32.totalorder %s19, 1
      %s216 = scalar_select %p215, %s19, 1
      %p217 = scmp.lt.s32.totalorder %s214, 31
      %s218 = scalar_select %p217, %s214, 31
      %s219 = smul.addr %s216, 32
      %s220 = sadd.s32 %s218, %s219
      %s221 = smul.addr %s220, 8
      %s222 = scalar_lea.vmem %s2, %s221
      %s223 = smul.u32 32, %s20
      %s224 = smul.u32 32, %s20
      %p225 = scmp.lt.s32.totalorder %s19, 1
      %s226 = scalar_select %p225, %s19, 1
      %p227 = scmp.lt.s32.totalorder %s224, 31
      %s228 = scalar_select %p227, %s224, 31
      %s229 = smul.addr %s226, 32
      %s230 = sadd.s32 %s228, %s229
      %s231 = smul.addr %s230, 8
      %s232 = scalar_lea.vmem %s3, %s231
      %s233 = smul.u32 32, %s20
      %v234 = vld [vmem:[%s212] sm:$0xff]
      %v235 = vld [vmem:[%s212 + $0x8] sm:$0xff]
      %v236 = vld [vmem:[%s212 + $0x10] sm:$0xff]
      %v237 = vld [vmem:[%s212 + $0x18] sm:$0xff]
      %v238 = vld [vmem:[%s212 + $0x20] sm:$0xff]
      %v239 = vld [vmem:[%s212 + $0x28] sm:$0xff]
      %v240 = vld [vmem:[%s212 + $0x30] sm:$0xff]
      %v241 = vld [vmem:[%s212 + $0x38] sm:$0xff]
      %v242 = vld [vmem:[%s212 + $0x40] sm:$0xff]
      %v243 = vld [vmem:[%s212 + $0x48] sm:$0xff]
      %v244 = vld [vmem:[%s212 + $0x50] sm:$0xff]
      %v245 = vld [vmem:[%s212 + $0x58] sm:$0xff]
      %v246 = vld [vmem:[%s212 + $0x60] sm:$0xff]
      %v247 = vld [vmem:[%s212 + $0x68] sm:$0xff]
      %v248 = vld [vmem:[%s212 + $0x70] sm:$0xff]
      %v249 = vld [vmem:[%s212 + $0x78] sm:$0xff]
      %v250 = vld [vmem:[%s212 + $0x80] sm:$0xff]
      %v251 = vld [vmem:[%s212 + $0x88] sm:$0xff]
      %v252 = vld [vmem:[%s212 + $0x90] sm:$0xff]
      %v253 = vld [vmem:[%s212 + $0x98] sm:$0xff]
      %v254 = vld [vmem:[%s212 + $0xa0] sm:$0xff]
      %v255 = vld [vmem:[%s212 + $0xa8] sm:$0xff]
      %v256 = vld [vmem:[%s212 + $0xb0] sm:$0xff]
      %v257 = vld [vmem:[%s212 + $0xb8] sm:$0xff]
      %v258 = vld [vmem:[%s212 + $0xc0] sm:$0xff]
      %v259 = vld [vmem:[%s212 + $0xc8] sm:$0xff]
      %v260 = vld [vmem:[%s212 + $0xd0] sm:$0xff]
      %v261 = vld [vmem:[%s212 + $0xd8] sm:$0xff]
      %v262 = vld [vmem:[%s212 + $0xe0] sm:$0xff]
      %v263 = vld [vmem:[%s212 + $0xe8] sm:$0xff]
      %v264 = vld [vmem:[%s212 + $0xf0] sm:$0xff]
      %v265 = vld [vmem:[%s212 + $0xf8] sm:$0xff]
      %v266 = vld [vmem:[%s1] sm:$0xff]
      %v267 = vld [vmem:[%s1 + $0x8] sm:$0xff]
      %v268 = vld [vmem:[%s1 + $0x10] sm:$0xff]
      %v269 = vld [vmem:[%s1 + $0x18] sm:$0xff]
      %v270 = vld [vmem:[%s1 + $0x20] sm:$0x1]
      %v271 = vlaneseq
      %v272 = vshrl.u32 %v271, 7
      %v273 = vsub.s32 0, %v272
      %v274 = vrot.slane %v270, %v273
      %vm275 = vcmask 261120
      %v277 = vsel %vm275, %v234, 0
      %v280 = vsel %vm275, %v235, 0
      %v283 = vsel %vm275, %v236, 0
      %v286 = vsel %vm275, %v237, 0
      %v289 = vsel %vm275, %v238, 0
      %v292 = vsel %vm275, %v239, 0
      %v295 = vsel %vm275, %v240, 0
      %v298 = vsel %vm275, %v241, 0
      %v301 = vsel %vm275, %v242, 0
      %v304 = vsel %vm275, %v243, 0
      %v307 = vsel %vm275, %v244, 0
      %v310 = vsel %vm275, %v245, 0
      %v313 = vsel %vm275, %v246, 0
      %v316 = vsel %vm275, %v247, 0
      %v319 = vsel %vm275, %v248, 0
      %v322 = vsel %vm275, %v249, 0
      %v325 = vsel %vm275, %v250, 0
      %v328 = vsel %vm275, %v251, 0
      %v331 = vsel %vm275, %v252, 0
      %v334 = vsel %vm275, %v253, 0
      %v337 = vsel %vm275, %v254, 0
      %v340 = vsel %vm275, %v255, 0
      %v343 = vsel %vm275, %v256, 0
      %v346 = vsel %vm275, %v257, 0
      %v349 = vsel %vm275, %v258, 0
      %v352 = vsel %vm275, %v259, 0
      %v355 = vsel %vm275, %v260, 0
      %v358 = vsel %vm275, %v261, 0
      %v361 = vsel %vm275, %v262, 0
      %v364 = vsel %vm275, %v263, 0
      %v367 = vsel %vm275, %v264, 0
      %v370 = vsel %vm275, %v265, 0
      %372 = vmatprep.subr.mxu0 0.0
      %373 = vmatpush1.msra.mxu0 0.0
      %374 = vmatprep.subr.mxu0 0.0
      %375 = vmatpush1.msra.mxu0 0.0
      %376 = vmatprep.subr.mxu0 0.0
      %377 = vmatpush1.msra.mxu0 0.0
      %378 = vmatprep.subr.mxu0 0.0
      %379 = vmatpush1.msra.mxu0 0.0
      %380 = vmatprep.subr.mxu0 0.0
      %381 = vmatpush1.msra.mxu0 0.0
      %382 = vmatprep.subr.mxu0 0.0
      %383 = vmatpush1.msra.mxu0 0.0
      %384 = vmatprep.subr.mxu0 0.0
      %385 = vmatpush1.msra.mxu0 0.0
      %386 = vmatprep.subr.mxu0 0.0
      %387 = vmatpush1.msra.mxu0 0.0
      %388 = vmatprep.subr.mxu0 0.0
      %389 = vmatpush1.msra.mxu0 0.0
      %390 = vmatprep.subr.mxu0 0.0
      %391 = vmatpush1.msra.mxu0 0.0
      %392 = vmatprep.subr.mxu0 0.0
      %393 = vmatpush1.msra.mxu0 0.0
      %394 = vmatprep.subr.mxu0 0.0
      %395 = vmatpush1.msra.mxu0 0.0
      %396 = vmatprep.subr.mxu0 0.0
      %397 = vmatpush1.msra.mxu0 %v269
      %398 = vmatprep.subr.mxu0 0.0
      %399 = vmatpush1.msra.mxu0 %v268
      %400 = vmatprep.subr.mxu0 0.0
      %401 = vmatpush1.msra.mxu0 %v267
      %402 = vmatprep.subr.mxu0 0.0
      %403 = vmatpush1.msra.mxu0 %v266
      %404 = vmatprep.subr.mxu0 0.0
      %405 = vmatpush2.msra.mxu0 0.0
      %406 = vmatprep.subr.mxu0 0.0
      %407 = vmatpush2.msra.mxu0 0.0
      %408 = vmatprep.subr.mxu0 0.0
      %409 = vmatpush2.msra.mxu0 0.0
      %410 = vmatprep.subr.mxu0 0.0
      %411 = vmatpush2.msra.mxu0 0.0
      %412 = vmatprep.subr.mxu0 0.0
      %413 = vmatpush2.msra.mxu0 0.0
      %414 = vmatprep.subr.mxu0 0.0
      %415 = vmatpush2.msra.mxu0 0.0
      %416 = vmatprep.subr.mxu0 0.0
      %417 = vmatpush2.msra.mxu0 0.0
      %418 = vmatprep.subr.mxu0 0.0
      %419 = vmatpush2.msra.mxu0 0.0
      %420 = vmatprep.subr.mxu0 0.0
      %421 = vmatpush2.msra.mxu0 0.0
      %422 = vmatprep.subr.mxu0 0.0
      %423 = vmatpush2.msra.mxu0 0.0
      %424 = vmatprep.subr.mxu0 0.0
      %425 = vmatpush2.msra.mxu0 0.0
      %426 = vmatprep.subr.mxu0 0.0
      %427 = vmatpush2.msra.mxu0 0.0
      %428 = vmatprep.subr.mxu0 0.0
      %429 = vmatpush2.msra.mxu0 0.0
      %430 = vmatprep.subr.mxu0 0.0
      %431 = vmatpush2.msra.mxu0 0.0
      %432 = vmatprep.subr.mxu0 0.0
      %433 = vmatpush2.msra.mxu0 0.0
      %434 = vmatprep.subr.mxu0 0.0
      %435 = vmatpush2.msra.mxu0 0.0
      %436 = vmatprep.mubr.f32.mxu0 0.0
      %437 = vmatmul.mubr.f32.gmra.mxu0 %v277
      %v438 = vpop.f32.mrf.mxu0
      %v439 = vadd.f32 %v274, %v438
      %v440 = vpop.f32.mrf.mxu0
      %441 = vmatprep.mubr.f32.mxu0 0.0
      %442 = vmatmul.mubr.f32.gmra.mxu0 %v280
      %v443 = vpop.f32.mrf.mxu0
      %v444 = vadd.f32 %v274, %v443
      %v445 = vpop.f32.mrf.mxu0
      %446 = vmatprep.mubr.f32.mxu0 0.0
      %447 = vmatmul.mubr.f32.gmra.mxu0 %v283
      %v448 = vpop.f32.mrf.mxu0
      %v449 = vadd.f32 %v274, %v448
      %v450 = vpop.f32.mrf.mxu0
      %451 = vmatprep.mubr.f32.mxu0 0.0
      %452 = vmatmul.mubr.f32.gmra.mxu0 %v286
      %v453 = vpop.f32.mrf.mxu0
      %v454 = vadd.f32 %v274, %v453
      %v455 = vpop.f32.mrf.mxu0
      %456 = vmatprep.mubr.f32.mxu0 0.0
      %457 = vmatmul.mubr.f32.gmra.mxu0 %v289
      %v458 = vpop.f32.mrf.mxu0
      %v459 = vadd.f32 %v274, %v458
      %v460 = vpop.f32.mrf.mxu0
      %461 = vmatprep.mubr.f32.mxu0 0.0
      %462 = vmatmul.mubr.f32.gmra.mxu0 %v292
      %v463 = vpop.f32.mrf.mxu0
      %v464 = vadd.f32 %v274, %v463
      %v465 = vpop.f32.mrf.mxu0
      %466 = vmatprep.mubr.f32.mxu0 0.0
      %467 = vmatmul.mubr.f32.gmra.mxu0 %v295
      %v468 = vpop.f32.mrf.mxu0
      %v469 = vadd.f32 %v274, %v468
      %v470 = vpop.f32.mrf.mxu0
      %471 = vmatprep.mubr.f32.mxu0 0.0
      %472 = vmatmul.mubr.f32.gmra.mxu0 %v298
      %v473 = vpop.f32.mrf.mxu0
      %v474 = vadd.f32 %v274, %v473
      %v475 = vpop.f32.mrf.mxu0
      %476 = vmatprep.mubr.f32.mxu0 0.0
      %477 = vmatmul.mubr.f32.gmra.mxu0 %v301
      %v478 = vpop.f32.mrf.mxu0
      %v479 = vadd.f32 %v274, %v478
      %v480 = vpop.f32.mrf.mxu0
      %481 = vmatprep.mubr.f32.mxu0 0.0
      %482 = vmatmul.mubr.f32.gmra.mxu0 %v304
      %v483 = vpop.f32.mrf.mxu0
      %v484 = vadd.f32 %v274, %v483
      %v485 = vpop.f32.mrf.mxu0
      %486 = vmatprep.mubr.f32.mxu0 0.0
      %487 = vmatmul.mubr.f32.gmra.mxu0 %v307
      %v488 = vpop.f32.mrf.mxu0
      %v489 = vadd.f32 %v274, %v488
      %v490 = vpop.f32.mrf.mxu0
      %491 = vmatprep.mubr.f32.mxu0 0.0
      %492 = vmatmul.mubr.f32.gmra.mxu0 %v310
      %v493 = vpop.f32.mrf.mxu0
      %v494 = vadd.f32 %v274, %v493
      %v495 = vpop.f32.mrf.mxu0
      %496 = vmatprep.mubr.f32.mxu0 0.0
      %497 = vmatmul.mubr.f32.gmra.mxu0 %v313
      %v498 = vpop.f32.mrf.mxu0
      %v499 = vadd.f32 %v274, %v498
      %v500 = vpop.f32.mrf.mxu0
      %501 = vmatprep.mubr.f32.mxu0 0.0
      %502 = vmatmul.mubr.f32.gmra.mxu0 %v316
      %v503 = vpop.f32.mrf.mxu0
      %v504 = vadd.f32 %v274, %v503
      %v505 = vpop.f32.mrf.mxu0
      %506 = vmatprep.mubr.f32.mxu0 0.0
      %507 = vmatmul.mubr.f32.gmra.mxu0 %v319
      %v508 = vpop.f32.mrf.mxu0
      %v509 = vadd.f32 %v274, %v508
      %v510 = vpop.f32.mrf.mxu0
      %511 = vmatprep.mubr.f32.mxu0 0.0
      %512 = vmatmul.mubr.f32.gmra.mxu0 %v322
      %v513 = vpop.f32.mrf.mxu0
      %v514 = vadd.f32 %v274, %v513
      %v515 = vpop.f32.mrf.mxu0
      %516 = vmatprep.mubr.f32.mxu0 0.0
      %517 = vmatmul.mubr.f32.gmra.mxu0 %v325
      %v518 = vpop.f32.mrf.mxu0
      %v519 = vadd.f32 %v274, %v518
      %v520 = vpop.f32.mrf.mxu0
      %521 = vmatprep.mubr.f32.mxu0 0.0
      %522 = vmatmul.mubr.f32.gmra.mxu0 %v328
      %v523 = vpop.f32.mrf.mxu0
      %v524 = vadd.f32 %v274, %v523
      %v525 = vpop.f32.mrf.mxu0
      %526 = vmatprep.mubr.f32.mxu0 0.0
      %527 = vmatmul.mubr.f32.gmra.mxu0 %v331
      %v528 = vpop.f32.mrf.mxu0
      %v529 = vadd.f32 %v274, %v528
      %v530 = vpop.f32.mrf.mxu0
      %531 = vmatprep.mubr.f32.mxu0 0.0
      %532 = vmatmul.mubr.f32.gmra.mxu0 %v334
      %v533 = vpop.f32.mrf.mxu0
      %v534 = vadd.f32 %v274, %v533
      %v535 = vpop.f32.mrf.mxu0
      %536 = vmatprep.mubr.f32.mxu0 0.0
      %537 = vmatmul.mubr.f32.gmra.mxu0 %v337
      %v538 = vpop.f32.mrf.mxu0
      %v539 = vadd.f32 %v274, %v538
      %v540 = vpop.f32.mrf.mxu0
      %541 = vmatprep.mubr.f32.mxu0 0.0
      %542 = vmatmul.mubr.f32.gmra.mxu0 %v340
      %v543 = vpop.f32.mrf.mxu0
      %v544 = vadd.f32 %v274, %v543
      %v545 = vpop.f32.mrf.mxu0
      %546 = vmatprep.mubr.f32.mxu0 0.0
      %547 = vmatmul.mubr.f32.gmra.mxu0 %v343
      %v548 = vpop.f32.mrf.mxu0
      %v549 = vadd.f32 %v274, %v548
      %v550 = vpop.f32.mrf.mxu0
      %551 = vmatprep.mubr.f32.mxu0 0.0
      %552 = vmatmul.mubr.f32.gmra.mxu0 %v346
      %v553 = vpop.f32.mrf.mxu0
      %v554 = vadd.f32 %v274, %v553
      %v555 = vpop.f32.mrf.mxu0
      %556 = vmatprep.mubr.f32.mxu0 0.0
      %557 = vmatmul.mubr.f32.gmra.mxu0 %v349
      %v558 = vpop.f32.mrf.mxu0
      %v559 = vadd.f32 %v274, %v558
      %v560 = vpop.f32.mrf.mxu0
      %561 = vmatprep.mubr.f32.mxu0 0.0
      %562 = vmatmul.mubr.f32.gmra.mxu0 %v352
      %v563 = vpop.f32.mrf.mxu0
      %v564 = vadd.f32 %v274, %v563
      %v565 = vpop.f32.mrf.mxu0
      %566 = vmatprep.mubr.f32.mxu0 0.0
      %567 = vmatmul.mubr.f32.gmra.mxu0 %v355
      %v568 = vpop.f32.mrf.mxu0
      %v569 = vadd.f32 %v274, %v568
      %v570 = vpop.f32.mrf.mxu0
      %571 = vmatprep.mubr.f32.mxu0 0.0
      %572 = vmatmul.mubr.f32.gmra.mxu0 %v358
      %v573 = vpop.f32.mrf.mxu0
      %v574 = vadd.f32 %v274, %v573
      %v575 = vpop.f32.mrf.mxu0
      %576 = vmatprep.mubr.f32.mxu0 0.0
      %577 = vmatmul.mubr.f32.gmra.mxu0 %v361
      %v578 = vpop.f32.mrf.mxu0
      %v579 = vadd.f32 %v274, %v578
      %v580 = vpop.f32.mrf.mxu0
      %581 = vmatprep.mubr.f32.mxu0 0.0
      %582 = vmatmul.mubr.f32.gmra.mxu0 %v364
      %v583 = vpop.f32.mrf.mxu0
      %v584 = vadd.f32 %v274, %v583
      %v585 = vpop.f32.mrf.mxu0
      %586 = vmatprep.mubr.f32.mxu0 0.0
      %587 = vmatmul.mubr.f32.gmra.mxu0 %v367
      %v588 = vpop.f32.mrf.mxu0
      %v589 = vadd.f32 %v274, %v588
      %v590 = vpop.f32.mrf.mxu0
      %591 = vmatprep.mubr.f32.mxu0 0.0
      %592 = vmatmul.mubr.f32.gmra.mxu0 %v370
      %v593 = vpop.f32.mrf.mxu0
      %v594 = vadd.f32 %v274, %v593
      %v595 = vpop.f32.mrf.mxu0
      %596 = vdwg.mxu0
      %v597 = vmax.f32 %v439, 0.0
      %v598 = vmax.f32 %v444, 0.0
      %v599 = vmax.f32 %v449, 0.0
      %v600 = vmax.f32 %v454, 0.0
      %v601 = vmax.f32 %v459, 0.0
      %v602 = vmax.f32 %v464, 0.0
      %v603 = vmax.f32 %v469, 0.0
      %v604 = vmax.f32 %v474, 0.0
      %v605 = vmax.f32 %v479, 0.0
      %v606 = vmax.f32 %v484, 0.0
      %v607 = vmax.f32 %v489, 0.0
      %v608 = vmax.f32 %v494, 0.0
      %v609 = vmax.f32 %v499, 0.0
      %v610 = vmax.f32 %v504, 0.0
      %v611 = vmax.f32 %v509, 0.0
      %v612 = vmax.f32 %v514, 0.0
      %v613 = vmax.f32 %v519, 0.0
      %v614 = vmax.f32 %v524, 0.0
      %v615 = vmax.f32 %v529, 0.0
      %v616 = vmax.f32 %v534, 0.0
      %v617 = vmax.f32 %v539, 0.0
      %v618 = vmax.f32 %v544, 0.0
      %v619 = vmax.f32 %v549, 0.0
      %v620 = vmax.f32 %v554, 0.0
      %v621 = vmax.f32 %v559, 0.0
      %v622 = vmax.f32 %v564, 0.0
      %v623 = vmax.f32 %v569, 0.0
      %v624 = vmax.f32 %v574, 0.0
      %v625 = vmax.f32 %v579, 0.0
      %v626 = vmax.f32 %v584, 0.0
      %v627 = vmax.f32 %v589, 0.0
      %v628 = vmax.f32 %v594, 0.0
      %v629 = vld [vmem:[%s1 + $0x28] sm:$0xff]
      %v630 = vld [vmem:[%s1 + $0x30] sm:$0xff]
      %v631 = vld [vmem:[%s1 + $0x38] sm:$0xff]
      %v632 = vld [vmem:[%s1 + $0x40] sm:$0xff]
      %v633 = vld [vmem:[%s1 + $0x48] sm:$0xff]
      %v634 = vld [vmem:[%s1 + $0x50] sm:$0xff]
      %v635 = vld [vmem:[%s1 + $0x58] sm:$0xff]
      %v636 = vld [vmem:[%s1 + $0x60] sm:$0xff]
      %v637 = vld [vmem:[%s1 + $0x68] sm:$0x1]
      %v638 = vlaneseq
      %v639 = vshrl.u32 %v638, 7
      %v640 = vsub.s32 0, %v639
      %v641 = vrot.slane %v637, %v640
      %vm642 = vcmask 523264
      %v644 = vsel %vm642, %v597, 0
      %v647 = vsel %vm642, %v598, 0
      %v650 = vsel %vm642, %v599, 0
      %v653 = vsel %vm642, %v600, 0
      %v656 = vsel %vm642, %v601, 0
      %v659 = vsel %vm642, %v602, 0
      %v662 = vsel %vm642, %v603, 0
      %v665 = vsel %vm642, %v604, 0
      %v668 = vsel %vm642, %v605, 0
      %v671 = vsel %vm642, %v606, 0
      %v674 = vsel %vm642, %v607, 0
      %v677 = vsel %vm642, %v608, 0
      %v680 = vsel %vm642, %v609, 0
      %v683 = vsel %vm642, %v610, 0
      %v686 = vsel %vm642, %v611, 0
      %v689 = vsel %vm642, %v612, 0
      %v692 = vsel %vm642, %v613, 0
      %v695 = vsel %vm642, %v614, 0
      %v698 = vsel %vm642, %v615, 0
      %v701 = vsel %vm642, %v616, 0
      %v704 = vsel %vm642, %v617, 0
      %v707 = vsel %vm642, %v618, 0
      %v710 = vsel %vm642, %v619, 0
      %v713 = vsel %vm642, %v620, 0
      %v716 = vsel %vm642, %v621, 0
      %v719 = vsel %vm642, %v622, 0
      %v722 = vsel %vm642, %v623, 0
      %v725 = vsel %vm642, %v624, 0
      %v728 = vsel %vm642, %v625, 0
      %v731 = vsel %vm642, %v626, 0
      %v734 = vsel %vm642, %v627, 0
      %v737 = vsel %vm642, %v628, 0
      %739 = vmatprep.subr.mxu0 0.0
      %740 = vmatpush1.msra.mxu0 0.0
      %741 = vmatprep.subr.mxu0 0.0
      %742 = vmatpush1.msra.mxu0 0.0
      %743 = vmatprep.subr.mxu0 0.0
      %744 = vmatpush1.msra.mxu0 0.0
      %745 = vmatprep.subr.mxu0 0.0
      %746 = vmatpush1.msra.mxu0 0.0
      %747 = vmatprep.subr.mxu0 0.0
      %748 = vmatpush1.msra.mxu0 0.0
      %749 = vmatprep.subr.mxu0 0.0
      %750 = vmatpush1.msra.mxu0 0.0
      %751 = vmatprep.subr.mxu0 0.0
      %752 = vmatpush1.msra.mxu0 0.0
      %753 = vmatprep.subr.mxu0 0.0
      %754 = vmatpush1.msra.mxu0 0.0
      %755 = vmatprep.subr.mxu0 0.0
      %756 = vmatpush1.msra.mxu0 %v636
      %757 = vmatprep.subr.mxu0 0.0
      %758 = vmatpush1.msra.mxu0 %v635
      %759 = vmatprep.subr.mxu0 0.0
      %760 = vmatpush1.msra.mxu0 %v634
      %761 = vmatprep.subr.mxu0 0.0
      %762 = vmatpush1.msra.mxu0 %v633
      %763 = vmatprep.subr.mxu0 0.0
      %764 = vmatpush1.msra.mxu0 %v632
      %765 = vmatprep.subr.mxu0 0.0
      %766 = vmatpush1.msra.mxu0 %v631
      %767 = vmatprep.subr.mxu0 0.0
      %768 = vmatpush1.msra.mxu0 %v630
      %769 = vmatprep.subr.mxu0 0.0
      %770 = vmatpush1.msra.mxu0 %v629
      %771 = vmatprep.subr.mxu0 0.0
      %772 = vmatpush2.msra.mxu0 0.0
      %773 = vmatprep.subr.mxu0 0.0
      %774 = vmatpush2.msra.mxu0 0.0
      %775 = vmatprep.subr.mxu0 0.0
      %776 = vmatpush2.msra.mxu0 0.0
      %777 = vmatprep.subr.mxu0 0.0
      %778 = vmatpush2.msra.mxu0 0.0
      %779 = vmatprep.subr.mxu0 0.0
      %780 = vmatpush2.msra.mxu0 0.0
      %781 = vmatprep.subr.mxu0 0.0
      %782 = vmatpush2.msra.mxu0 0.0
      %783 = vmatprep.subr.mxu0 0.0
      %784 = vmatpush2.msra.mxu0 0.0
      %785 = vmatprep.subr.mxu0 0.0
      %786 = vmatpush2.msra.mxu0 0.0
      %787 = vmatprep.subr.mxu0 0.0
      %788 = vmatpush2.msra.mxu0 0.0
      %789 = vmatprep.subr.mxu0 0.0
      %790 = vmatpush2.msra.mxu0 0.0
      %791 = vmatprep.subr.mxu0 0.0
      %792 = vmatpush2.msra.mxu0 0.0
      %793 = vmatprep.subr.mxu0 0.0
      %794 = vmatpush2.msra.mxu0 0.0
      %795 = vmatprep.subr.mxu0 0.0
      %796 = vmatpush2.msra.mxu0 0.0
      %797 = vmatprep.subr.mxu0 0.0
      %798 = vmatpush2.msra.mxu0 0.0
      %799 = vmatprep.subr.mxu0 0.0
      %800 = vmatpush2.msra.mxu0 0.0
      %801 = vmatprep.subr.mxu0 0.0
      %802 = vmatpush2.msra.mxu0 0.0
      %803 = vmatprep.mubr.f32.mxu0 0.0
      %804 = vmatmul.mubr.f32.gmra.mxu0 %v644
      %v805 = vpop.f32.mrf.mxu0
      %v806 = vadd.f32 %v641, %v805
      %v807 = vpop.f32.mrf.mxu0
      %808 = vmatprep.mubr.f32.mxu0 0.0
      %809 = vmatmul.mubr.f32.gmra.mxu0 %v647
      %v810 = vpop.f32.mrf.mxu0
      %v811 = vadd.f32 %v641, %v810
      %v812 = vpop.f32.mrf.mxu0
      %813 = vmatprep.mubr.f32.mxu0 0.0
      %814 = vmatmul.mubr.f32.gmra.mxu0 %v650
      %v815 = vpop.f32.mrf.mxu0
      %v816 = vadd.f32 %v641, %v815
      %v817 = vpop.f32.mrf.mxu0
      %818 = vmatprep.mubr.f32.mxu0 0.0
      %819 = vmatmul.mubr.f32.gmra.mxu0 %v653
      %v820 = vpop.f32.mrf.mxu0
      %v821 = vadd.f32 %v641, %v820
      %v822 = vpop.f32.mrf.mxu0
      %823 = vmatprep.mubr.f32.mxu0 0.0
      %824 = vmatmul.mubr.f32.gmra.mxu0 %v656
      %v825 = vpop.f32.mrf.mxu0
      %v826 = vadd.f32 %v641, %v825
      %v827 = vpop.f32.mrf.mxu0
      %828 = vmatprep.mubr.f32.mxu0 0.0
      %829 = vmatmul.mubr.f32.gmra.mxu0 %v659
      %v830 = vpop.f32.mrf.mxu0
      %v831 = vadd.f32 %v641, %v830
      %v832 = vpop.f32.mrf.mxu0
      %833 = vmatprep.mubr.f32.mxu0 0.0
      %834 = vmatmul.mubr.f32.gmra.mxu0 %v662
      %v835 = vpop.f32.mrf.mxu0
      %v836 = vadd.f32 %v641, %v835
      %v837 = vpop.f32.mrf.mxu0
      %838 = vmatprep.mubr.f32.mxu0 0.0
      %839 = vmatmul.mubr.f32.gmra.mxu0 %v665
      %v840 = vpop.f32.mrf.mxu0
      %v841 = vadd.f32 %v641, %v840
      %v842 = vpop.f32.mrf.mxu0
      %843 = vmatprep.mubr.f32.mxu0 0.0
      %844 = vmatmul.mubr.f32.gmra.mxu0 %v668
      %v845 = vpop.f32.mrf.mxu0
      %v846 = vadd.f32 %v641, %v845
      %v847 = vpop.f32.mrf.mxu0
      %848 = vmatprep.mubr.f32.mxu0 0.0
      %849 = vmatmul.mubr.f32.gmra.mxu0 %v671
      %v850 = vpop.f32.mrf.mxu0
      %v851 = vadd.f32 %v641, %v850
      %v852 = vpop.f32.mrf.mxu0
      %853 = vmatprep.mubr.f32.mxu0 0.0
      %854 = vmatmul.mubr.f32.gmra.mxu0 %v674
      %v855 = vpop.f32.mrf.mxu0
      %v856 = vadd.f32 %v641, %v855
      %v857 = vpop.f32.mrf.mxu0
      %858 = vmatprep.mubr.f32.mxu0 0.0
      %859 = vmatmul.mubr.f32.gmra.mxu0 %v677
      %v860 = vpop.f32.mrf.mxu0
      %v861 = vadd.f32 %v641, %v860
      %v862 = vpop.f32.mrf.mxu0
      %863 = vmatprep.mubr.f32.mxu0 0.0
      %864 = vmatmul.mubr.f32.gmra.mxu0 %v680
      %v865 = vpop.f32.mrf.mxu0
      %v866 = vadd.f32 %v641, %v865
      %v867 = vpop.f32.mrf.mxu0
      %868 = vmatprep.mubr.f32.mxu0 0.0
      %869 = vmatmul.mubr.f32.gmra.mxu0 %v683
      %v870 = vpop.f32.mrf.mxu0
      %v871 = vadd.f32 %v641, %v870
      %v872 = vpop.f32.mrf.mxu0
      %873 = vmatprep.mubr.f32.mxu0 0.0
      %874 = vmatmul.mubr.f32.gmra.mxu0 %v686
      %v875 = vpop.f32.mrf.mxu0
      %v876 = vadd.f32 %v641, %v875
      %v877 = vpop.f32.mrf.mxu0
      %878 = vmatprep.mubr.f32.mxu0 0.0
      %879 = vmatmul.mubr.f32.gmra.mxu0 %v689
      %v880 = vpop.f32.mrf.mxu0
      %v881 = vadd.f32 %v641, %v880
      %v882 = vpop.f32.mrf.mxu0
      %883 = vmatprep.mubr.f32.mxu0 0.0
      %884 = vmatmul.mubr.f32.gmra.mxu0 %v692
      %v885 = vpop.f32.mrf.mxu0
      %v886 = vadd.f32 %v641, %v885
      %v887 = vpop.f32.mrf.mxu0
      %888 = vmatprep.mubr.f32.mxu0 0.0
      %889 = vmatmul.mubr.f32.gmra.mxu0 %v695
      %v890 = vpop.f32.mrf.mxu0
      %v891 = vadd.f32 %v641, %v890
      %v892 = vpop.f32.mrf.mxu0
      %893 = vmatprep.mubr.f32.mxu0 0.0
      %894 = vmatmul.mubr.f32.gmra.mxu0 %v698
      %v895 = vpop.f32.mrf.mxu0
      %v896 = vadd.f32 %v641, %v895
      %v897 = vpop.f32.mrf.mxu0
      %898 = vmatprep.mubr.f32.mxu0 0.0
      %899 = vmatmul.mubr.f32.gmra.mxu0 %v701
      %v900 = vpop.f32.mrf.mxu0
      %v901 = vadd.f32 %v641, %v900
      %v902 = vpop.f32.mrf.mxu0
      %903 = vmatprep.mubr.f32.mxu0 0.0
      %904 = vmatmul.mubr.f32.gmra.mxu0 %v704
      %v905 = vpop.f32.mrf.mxu0
      %v906 = vadd.f32 %v641, %v905
      %v907 = vpop.f32.mrf.mxu0
      %908 = vmatprep.mubr.f32.mxu0 0.0
      %909 = vmatmul.mubr.f32.gmra.mxu0 %v707
      %v910 = vpop.f32.mrf.mxu0
      %v911 = vadd.f32 %v641, %v910
      %v912 = vpop.f32.mrf.mxu0
      %913 = vmatprep.mubr.f32.mxu0 0.0
      %914 = vmatmul.mubr.f32.gmra.mxu0 %v710
      %v915 = vpop.f32.mrf.mxu0
      %v916 = vadd.f32 %v641, %v915
      %v917 = vpop.f32.mrf.mxu0
      %918 = vmatprep.mubr.f32.mxu0 0.0
      %919 = vmatmul.mubr.f32.gmra.mxu0 %v713
      %v920 = vpop.f32.mrf.mxu0
      %v921 = vadd.f32 %v641, %v920
      %v922 = vpop.f32.mrf.mxu0
      %923 = vmatprep.mubr.f32.mxu0 0.0
      %924 = vmatmul.mubr.f32.gmra.mxu0 %v716
      %v925 = vpop.f32.mrf.mxu0
      %v926 = vadd.f32 %v641, %v925
      %v927 = vpop.f32.mrf.mxu0
      %928 = vmatprep.mubr.f32.mxu0 0.0
      %929 = vmatmul.mubr.f32.gmra.mxu0 %v719
      %v930 = vpop.f32.mrf.mxu0
      %v931 = vadd.f32 %v641, %v930
      %v932 = vpop.f32.mrf.mxu0
      %933 = vmatprep.mubr.f32.mxu0 0.0
      %934 = vmatmul.mubr.f32.gmra.mxu0 %v722
      %v935 = vpop.f32.mrf.mxu0
      %v936 = vadd.f32 %v641, %v935
      %v937 = vpop.f32.mrf.mxu0
      %938 = vmatprep.mubr.f32.mxu0 0.0
      %939 = vmatmul.mubr.f32.gmra.mxu0 %v725
      %v940 = vpop.f32.mrf.mxu0
      %v941 = vadd.f32 %v641, %v940
      %v942 = vpop.f32.mrf.mxu0
      %943 = vmatprep.mubr.f32.mxu0 0.0
      %944 = vmatmul.mubr.f32.gmra.mxu0 %v728
      %v945 = vpop.f32.mrf.mxu0
      %v946 = vadd.f32 %v641, %v945
      %v947 = vpop.f32.mrf.mxu0
      %948 = vmatprep.mubr.f32.mxu0 0.0
      %949 = vmatmul.mubr.f32.gmra.mxu0 %v731
      %v950 = vpop.f32.mrf.mxu0
      %v951 = vadd.f32 %v641, %v950
      %v952 = vpop.f32.mrf.mxu0
      %953 = vmatprep.mubr.f32.mxu0 0.0
      %954 = vmatmul.mubr.f32.gmra.mxu0 %v734
      %v955 = vpop.f32.mrf.mxu0
      %v956 = vadd.f32 %v641, %v955
      %v957 = vpop.f32.mrf.mxu0
      %958 = vmatprep.mubr.f32.mxu0 0.0
      %959 = vmatmul.mubr.f32.gmra.mxu0 %v737
      %v960 = vpop.f32.mrf.mxu0
      %v961 = vadd.f32 %v641, %v960
      %v962 = vpop.f32.mrf.mxu0
      %963 = vdwg.mxu0
      %v964 = vmax.f32 %v806, 0.0
      %v965 = vmax.f32 %v811, 0.0
      %v966 = vmax.f32 %v816, 0.0
      %v967 = vmax.f32 %v821, 0.0
      %v968 = vmax.f32 %v826, 0.0
      %v969 = vmax.f32 %v831, 0.0
      %v970 = vmax.f32 %v836, 0.0
      %v971 = vmax.f32 %v841, 0.0
      %v972 = vmax.f32 %v846, 0.0
      %v973 = vmax.f32 %v851, 0.0
      %v974 = vmax.f32 %v856, 0.0
      %v975 = vmax.f32 %v861, 0.0
      %v976 = vmax.f32 %v866, 0.0
      %v977 = vmax.f32 %v871, 0.0
      %v978 = vmax.f32 %v876, 0.0
      %v979 = vmax.f32 %v881, 0.0
      %v980 = vmax.f32 %v886, 0.0
      %v981 = vmax.f32 %v891, 0.0
      %v982 = vmax.f32 %v896, 0.0
      %v983 = vmax.f32 %v901, 0.0
      %v984 = vmax.f32 %v906, 0.0
      %v985 = vmax.f32 %v911, 0.0
      %v986 = vmax.f32 %v916, 0.0
      %v987 = vmax.f32 %v921, 0.0
      %v988 = vmax.f32 %v926, 0.0
      %v989 = vmax.f32 %v931, 0.0
      %v990 = vmax.f32 %v936, 0.0
      %v991 = vmax.f32 %v941, 0.0
      %v992 = vmax.f32 %v946, 0.0
      %v993 = vmax.f32 %v951, 0.0
      %v994 = vmax.f32 %v956, 0.0
      %v995 = vmax.f32 %v961, 0.0
      %996 = vst.msk [vmem:[%s222] sm:$0xff] %vm642, %v964
      %997 = vst.msk [vmem:[%s222 + $0x8] sm:$0xff] %vm642, %v965
      %998 = vst.msk [vmem:[%s222 + $0x10] sm:$0xff] %vm642, %v966
      %999 = vst.msk [vmem:[%s222 + $0x18] sm:$0xff] %vm642, %v967
      %1000 = vst.msk [vmem:[%s222 + $0x20] sm:$0xff] %vm642, %v968
      %1001 = vst.msk [vmem:[%s222 + $0x28] sm:$0xff] %vm642, %v969
      %1002 = vst.msk [vmem:[%s222 + $0x30] sm:$0xff] %vm642, %v970
      %1003 = vst.msk [vmem:[%s222 + $0x38] sm:$0xff] %vm642, %v971
      %1004 = vst.msk [vmem:[%s222 + $0x40] sm:$0xff] %vm642, %v972
      %1005 = vst.msk [vmem:[%s222 + $0x48] sm:$0xff] %vm642, %v973
      %1006 = vst.msk [vmem:[%s222 + $0x50] sm:$0xff] %vm642, %v974
      %1007 = vst.msk [vmem:[%s222 + $0x58] sm:$0xff] %vm642, %v975
      %1008 = vst.msk [vmem:[%s222 + $0x60] sm:$0xff] %vm642, %v976
      %1009 = vst.msk [vmem:[%s222 + $0x68] sm:$0xff] %vm642, %v977
      %1010 = vst.msk [vmem:[%s222 + $0x70] sm:$0xff] %vm642, %v978
      %1011 = vst.msk [vmem:[%s222 + $0x78] sm:$0xff] %vm642, %v979
      %1012 = vst.msk [vmem:[%s222 + $0x80] sm:$0xff] %vm642, %v980
      %1013 = vst.msk [vmem:[%s222 + $0x88] sm:$0xff] %vm642, %v981
      %1014 = vst.msk [vmem:[%s222 + $0x90] sm:$0xff] %vm642, %v982
      %1015 = vst.msk [vmem:[%s222 + $0x98] sm:$0xff] %vm642, %v983
      %1016 = vst.msk [vmem:[%s222 + $0xa0] sm:$0xff] %vm642, %v984
      %1017 = vst.msk [vmem:[%s222 + $0xa8] sm:$0xff] %vm642, %v985
      %1018 = vst.msk [vmem:[%s222 + $0xb0] sm:$0xff] %vm642, %v986
      %1019 = vst.msk [vmem:[%s222 + $0xb8] sm:$0xff] %vm642, %v987
      %1020 = vst.msk [vmem:[%s222 + $0xc0] sm:$0xff] %vm642, %v988
      %1021 = vst.msk [vmem:[%s222 + $0xc8] sm:$0xff] %vm642, %v989
      %1022 = vst.msk [vmem:[%s222 + $0xd0] sm:$0xff] %vm642, %v990
      %1023 = vst.msk [vmem:[%s222 + $0xd8] sm:$0xff] %vm642, %v991
      %1024 = vst.msk [vmem:[%s222 + $0xe0] sm:$0xff] %vm642, %v992
      %1025 = vst.msk [vmem:[%s222 + $0xe8] sm:$0xff] %vm642, %v993
      %1026 = vst.msk [vmem:[%s222 + $0xf0] sm:$0xff] %vm642, %v994
      %1027 = vst.msk [vmem:[%s222 + $0xf8] sm:$0xff] %vm642, %v995
      %v1028 = vld [vmem:[%s1 + $0x70] sm:$0xff]
      %v1029 = vld [vmem:[%s1 + $0x78] sm:$0xff]
      %v1030 = vld [vmem:[%s1 + $0x80] sm:$0xff]
      %v1031 = vld [vmem:[%s1 + $0x88] sm:$0xff]
      %v1032 = vld [vmem:[%s1 + $0x90] sm:$0xff]
      %v1033 = vld [vmem:[%s1 + $0x98] sm:$0xff]
      %v1034 = vld [vmem:[%s1 + $0xa0] sm:$0xff]
      %v1035 = vld [vmem:[%s1 + $0xa8] sm:$0xff]
      %v1036 = vld [vmem:[%s1 + $0xb0] sm:$0x1]
      %v1037 = vlaneseq
      %v1038 = vshrl.u32 %v1037, 7
      %v1039 = vsub.s32 0, %v1038
      %v1040 = vrot.slane %v1036, %v1039
      %v1042 = vsel %vm642, %v964, 0
      %v1045 = vsel %vm642, %v965, 0
      %v1048 = vsel %vm642, %v966, 0
      %v1051 = vsel %vm642, %v967, 0
      %v1054 = vsel %vm642, %v968, 0
      %v1057 = vsel %vm642, %v969, 0
      %v1060 = vsel %vm642, %v970, 0
      %v1063 = vsel %vm642, %v971, 0
      %v1066 = vsel %vm642, %v972, 0
      %v1069 = vsel %vm642, %v973, 0
      %v1072 = vsel %vm642, %v974, 0
      %v1075 = vsel %vm642, %v975, 0
      %v1078 = vsel %vm642, %v976, 0
      %v1081 = vsel %vm642, %v977, 0
      %v1084 = vsel %vm642, %v978, 0
      %v1087 = vsel %vm642, %v979, 0
      %v1090 = vsel %vm642, %v980, 0
      %v1093 = vsel %vm642, %v981, 0
      %v1096 = vsel %vm642, %v982, 0
      %v1099 = vsel %vm642, %v983, 0
      %v1102 = vsel %vm642, %v984, 0
      %v1105 = vsel %vm642, %v985, 0
      %v1108 = vsel %vm642, %v986, 0
      %v1111 = vsel %vm642, %v987, 0
      %v1114 = vsel %vm642, %v988, 0
      %v1117 = vsel %vm642, %v989, 0
      %v1120 = vsel %vm642, %v990, 0
      %v1123 = vsel %vm642, %v991, 0
      %v1126 = vsel %vm642, %v992, 0
      %v1129 = vsel %vm642, %v993, 0
      %v1132 = vsel %vm642, %v994, 0
      %v1135 = vsel %vm642, %v995, 0
      %1137 = vmatprep.subr.mxu0 0.0
      %1138 = vmatpush1.msra.mxu0 0.0
      %1139 = vmatprep.subr.mxu0 0.0
      %1140 = vmatpush1.msra.mxu0 0.0
      %1141 = vmatprep.subr.mxu0 0.0
      %1142 = vmatpush1.msra.mxu0 0.0
      %1143 = vmatprep.subr.mxu0 0.0
      %1144 = vmatpush1.msra.mxu0 0.0
      %1145 = vmatprep.subr.mxu0 0.0
      %1146 = vmatpush1.msra.mxu0 0.0
      %1147 = vmatprep.subr.mxu0 0.0
      %1148 = vmatpush1.msra.mxu0 0.0
      %1149 = vmatprep.subr.mxu0 0.0
      %1150 = vmatpush1.msra.mxu0 0.0
      %1151 = vmatprep.subr.mxu0 0.0
      %1152 = vmatpush1.msra.mxu0 0.0
      %1153 = vmatprep.subr.mxu0 0.0
      %1154 = vmatpush1.msra.mxu0 %v1035
      %1155 = vmatprep.subr.mxu0 0.0
      %1156 = vmatpush1.msra.mxu0 %v1034
      %1157 = vmatprep.subr.mxu0 0.0
      %1158 = vmatpush1.msra.mxu0 %v1033
      %1159 = vmatprep.subr.mxu0 0.0
      %1160 = vmatpush1.msra.mxu0 %v1032
      %1161 = vmatprep.subr.mxu0 0.0
      %1162 = vmatpush1.msra.mxu0 %v1031
      %1163 = vmatprep.subr.mxu0 0.0
      %1164 = vmatpush1.msra.mxu0 %v1030
      %1165 = vmatprep.subr.mxu0 0.0
      %1166 = vmatpush1.msra.mxu0 %v1029
      %1167 = vmatprep.subr.mxu0 0.0
      %1168 = vmatpush1.msra.mxu0 %v1028
      %1169 = vmatprep.subr.mxu0 0.0
      %1170 = vmatpush2.msra.mxu0 0.0
      %1171 = vmatprep.subr.mxu0 0.0
      %1172 = vmatpush2.msra.mxu0 0.0
      %1173 = vmatprep.subr.mxu0 0.0
      %1174 = vmatpush2.msra.mxu0 0.0
      %1175 = vmatprep.subr.mxu0 0.0
      %1176 = vmatpush2.msra.mxu0 0.0
      %1177 = vmatprep.subr.mxu0 0.0
      %1178 = vmatpush2.msra.mxu0 0.0
      %1179 = vmatprep.subr.mxu0 0.0
      %1180 = vmatpush2.msra.mxu0 0.0
      %1181 = vmatprep.subr.mxu0 0.0
      %1182 = vmatpush2.msra.mxu0 0.0
      %1183 = vmatprep.subr.mxu0 0.0
      %1184 = vmatpush2.msra.mxu0 0.0
      %1185 = vmatprep.subr.mxu0 0.0
      %1186 = vmatpush2.msra.mxu0 0.0
      %1187 = vmatprep.subr.mxu0 0.0
      %1188 = vmatpush2.msra.mxu0 0.0
      %1189 = vmatprep.subr.mxu0 0.0
      %1190 = vmatpush2.msra.mxu0 0.0
      %1191 = vmatprep.subr.mxu0 0.0
      %1192 = vmatpush2.msra.mxu0 0.0
      %1193 = vmatprep.subr.mxu0 0.0
      %1194 = vmatpush2.msra.mxu0 0.0
      %1195 = vmatprep.subr.mxu0 0.0
      %1196 = vmatpush2.msra.mxu0 0.0
      %1197 = vmatprep.subr.mxu0 0.0
      %1198 = vmatpush2.msra.mxu0 0.0
      %1199 = vmatprep.subr.mxu0 0.0
      %1200 = vmatpush2.msra.mxu0 0.0
      %1201 = vmatprep.mubr.f32.mxu0 0.0
      %1202 = vmatmul.mubr.f32.gmra.mxu0 %v1042
      %v1203 = vpop.f32.mrf.mxu0
      %v1204 = vadd.f32 %v1040, %v1203
      %v1205 = vpop.f32.mrf.mxu0
      %1206 = vmatprep.mubr.f32.mxu0 0.0
      %1207 = vmatmul.mubr.f32.gmra.mxu0 %v1045
      %v1208 = vpop.f32.mrf.mxu0
      %v1209 = vadd.f32 %v1040, %v1208
      %v1210 = vpop.f32.mrf.mxu0
      %1211 = vmatprep.mubr.f32.mxu0 0.0
      %1212 = vmatmul.mubr.f32.gmra.mxu0 %v1048
      %v1213 = vpop.f32.mrf.mxu0
      %v1214 = vadd.f32 %v1040, %v1213
      %v1215 = vpop.f32.mrf.mxu0
      %1216 = vmatprep.mubr.f32.mxu0 0.0
      %1217 = vmatmul.mubr.f32.gmra.mxu0 %v1051
      %v1218 = vpop.f32.mrf.mxu0
      %v1219 = vadd.f32 %v1040, %v1218
      %v1220 = vpop.f32.mrf.mxu0
      %1221 = vmatprep.mubr.f32.mxu0 0.0
      %1222 = vmatmul.mubr.f32.gmra.mxu0 %v1054
      %v1223 = vpop.f32.mrf.mxu0
      %v1224 = vadd.f32 %v1040, %v1223
      %v1225 = vpop.f32.mrf.mxu0
      %1226 = vmatprep.mubr.f32.mxu0 0.0
      %1227 = vmatmul.mubr.f32.gmra.mxu0 %v1057
      %v1228 = vpop.f32.mrf.mxu0
      %v1229 = vadd.f32 %v1040, %v1228
      %v1230 = vpop.f32.mrf.mxu0
      %1231 = vmatprep.mubr.f32.mxu0 0.0
      %1232 = vmatmul.mubr.f32.gmra.mxu0 %v1060
      %v1233 = vpop.f32.mrf.mxu0
      %v1234 = vadd.f32 %v1040, %v1233
      %v1235 = vpop.f32.mrf.mxu0
      %1236 = vmatprep.mubr.f32.mxu0 0.0
      %1237 = vmatmul.mubr.f32.gmra.mxu0 %v1063
      %v1238 = vpop.f32.mrf.mxu0
      %v1239 = vadd.f32 %v1040, %v1238
      %v1240 = vpop.f32.mrf.mxu0
      %1241 = vmatprep.mubr.f32.mxu0 0.0
      %1242 = vmatmul.mubr.f32.gmra.mxu0 %v1066
      %v1243 = vpop.f32.mrf.mxu0
      %v1244 = vadd.f32 %v1040, %v1243
      %v1245 = vpop.f32.mrf.mxu0
      %1246 = vmatprep.mubr.f32.mxu0 0.0
      %1247 = vmatmul.mubr.f32.gmra.mxu0 %v1069
      %v1248 = vpop.f32.mrf.mxu0
      %v1249 = vadd.f32 %v1040, %v1248
      %v1250 = vpop.f32.mrf.mxu0
      %1251 = vmatprep.mubr.f32.mxu0 0.0
      %1252 = vmatmul.mubr.f32.gmra.mxu0 %v1072
      %v1253 = vpop.f32.mrf.mxu0
      %v1254 = vadd.f32 %v1040, %v1253
      %v1255 = vpop.f32.mrf.mxu0
      %1256 = vmatprep.mubr.f32.mxu0 0.0
      %1257 = vmatmul.mubr.f32.gmra.mxu0 %v1075
      %v1258 = vpop.f32.mrf.mxu0
      %v1259 = vadd.f32 %v1040, %v1258
      %v1260 = vpop.f32.mrf.mxu0
      %1261 = vmatprep.mubr.f32.mxu0 0.0
      %1262 = vmatmul.mubr.f32.gmra.mxu0 %v1078
      %v1263 = vpop.f32.mrf.mxu0
      %v1264 = vadd.f32 %v1040, %v1263
      %v1265 = vpop.f32.mrf.mxu0
      %1266 = vmatprep.mubr.f32.mxu0 0.0
      %1267 = vmatmul.mubr.f32.gmra.mxu0 %v1081
      %v1268 = vpop.f32.mrf.mxu0
      %v1269 = vadd.f32 %v1040, %v1268
      %v1270 = vpop.f32.mrf.mxu0
      %1271 = vmatprep.mubr.f32.mxu0 0.0
      %1272 = vmatmul.mubr.f32.gmra.mxu0 %v1084
      %v1273 = vpop.f32.mrf.mxu0
      %v1274 = vadd.f32 %v1040, %v1273
      %v1275 = vpop.f32.mrf.mxu0
      %1276 = vmatprep.mubr.f32.mxu0 0.0
      %1277 = vmatmul.mubr.f32.gmra.mxu0 %v1087
      %v1278 = vpop.f32.mrf.mxu0
      %v1279 = vadd.f32 %v1040, %v1278
      %v1280 = vpop.f32.mrf.mxu0
      %1281 = vmatprep.mubr.f32.mxu0 0.0
      %1282 = vmatmul.mubr.f32.gmra.mxu0 %v1090
      %v1283 = vpop.f32.mrf.mxu0
      %v1284 = vadd.f32 %v1040, %v1283
      %v1285 = vpop.f32.mrf.mxu0
      %1286 = vmatprep.mubr.f32.mxu0 0.0
      %1287 = vmatmul.mubr.f32.gmra.mxu0 %v1093
      %v1288 = vpop.f32.mrf.mxu0
      %v1289 = vadd.f32 %v1040, %v1288
      %v1290 = vpop.f32.mrf.mxu0
      %1291 = vmatprep.mubr.f32.mxu0 0.0
      %1292 = vmatmul.mubr.f32.gmra.mxu0 %v1096
      %v1293 = vpop.f32.mrf.mxu0
      %v1294 = vadd.f32 %v1040, %v1293
      %v1295 = vpop.f32.mrf.mxu0
      %1296 = vmatprep.mubr.f32.mxu0 0.0
      %1297 = vmatmul.mubr.f32.gmra.mxu0 %v1099
      %v1298 = vpop.f32.mrf.mxu0
      %v1299 = vadd.f32 %v1040, %v1298
      %v1300 = vpop.f32.mrf.mxu0
      %1301 = vmatprep.mubr.f32.mxu0 0.0
      %1302 = vmatmul.mubr.f32.gmra.mxu0 %v1102
      %v1303 = vpop.f32.mrf.mxu0
      %v1304 = vadd.f32 %v1040, %v1303
      %v1305 = vpop.f32.mrf.mxu0
      %1306 = vmatprep.mubr.f32.mxu0 0.0
      %1307 = vmatmul.mubr.f32.gmra.mxu0 %v1105
      %v1308 = vpop.f32.mrf.mxu0
      %v1309 = vadd.f32 %v1040, %v1308
      %v1310 = vpop.f32.mrf.mxu0
      %1311 = vmatprep.mubr.f32.mxu0 0.0
      %1312 = vmatmul.mubr.f32.gmra.mxu0 %v1108
      %v1313 = vpop.f32.mrf.mxu0
      %v1314 = vadd.f32 %v1040, %v1313
      %v1315 = vpop.f32.mrf.mxu0
      %1316 = vmatprep.mubr.f32.mxu0 0.0
      %1317 = vmatmul.mubr.f32.gmra.mxu0 %v1111
      %v1318 = vpop.f32.mrf.mxu0
      %v1319 = vadd.f32 %v1040, %v1318
      %v1320 = vpop.f32.mrf.mxu0
      %1321 = vmatprep.mubr.f32.mxu0 0.0
      %1322 = vmatmul.mubr.f32.gmra.mxu0 %v1114
      %v1323 = vpop.f32.mrf.mxu0
      %v1324 = vadd.f32 %v1040, %v1323
      %v1325 = vpop.f32.mrf.mxu0
      %1326 = vmatprep.mubr.f32.mxu0 0.0
      %1327 = vmatmul.mubr.f32.gmra.mxu0 %v1117
      %v1328 = vpop.f32.mrf.mxu0
      %v1329 = vadd.f32 %v1040, %v1328
      %v1330 = vpop.f32.mrf.mxu0
      %1331 = vmatprep.mubr.f32.mxu0 0.0
      %1332 = vmatmul.mubr.f32.gmra.mxu0 %v1120
      %v1333 = vpop.f32.mrf.mxu0
      %v1334 = vadd.f32 %v1040, %v1333
      %v1335 = vpop.f32.mrf.mxu0
      %1336 = vmatprep.mubr.f32.mxu0 0.0
      %1337 = vmatmul.mubr.f32.gmra.mxu0 %v1123
      %v1338 = vpop.f32.mrf.mxu0
      %v1339 = vadd.f32 %v1040, %v1338
      %v1340 = vpop.f32.mrf.mxu0
      %1341 = vmatprep.mubr.f32.mxu0 0.0
      %1342 = vmatmul.mubr.f32.gmra.mxu0 %v1126
      %v1343 = vpop.f32.mrf.mxu0
      %v1344 = vadd.f32 %v1040, %v1343
      %v1345 = vpop.f32.mrf.mxu0
      %1346 = vmatprep.mubr.f32.mxu0 0.0
      %1347 = vmatmul.mubr.f32.gmra.mxu0 %v1129
      %v1348 = vpop.f32.mrf.mxu0
      %v1349 = vadd.f32 %v1040, %v1348
      %v1350 = vpop.f32.mrf.mxu0
      %1351 = vmatprep.mubr.f32.mxu0 0.0
      %1352 = vmatmul.mubr.f32.gmra.mxu0 %v1132
      %v1353 = vpop.f32.mrf.mxu0
      %v1354 = vadd.f32 %v1040, %v1353
      %v1355 = vpop.f32.mrf.mxu0
      %1356 = vmatprep.mubr.f32.mxu0 0.0
      %1357 = vmatmul.mubr.f32.gmra.mxu0 %v1135
      %v1358 = vpop.f32.mrf.mxu0
      %v1359 = vadd.f32 %v1040, %v1358
      %v1360 = vpop.f32.mrf.mxu0
      %1361 = vdwg.mxu0
      %vm1362 = vcmask 23552
      %1363 = vst.msk [vmem:[%s232] sm:$0xff] %vm1362, %v1204
      %1364 = vst.msk [vmem:[%s232 + $0x8] sm:$0xff] %vm1362, %v1209
      %1365 = vst.msk [vmem:[%s232 + $0x10] sm:$0xff] %vm1362, %v1214
      %1366 = vst.msk [vmem:[%s232 + $0x18] sm:$0xff] %vm1362, %v1219
      %1367 = vst.msk [vmem:[%s232 + $0x20] sm:$0xff] %vm1362, %v1224
      %1368 = vst.msk [vmem:[%s232 + $0x28] sm:$0xff] %vm1362, %v1229
      %1369 = vst.msk [vmem:[%s232 + $0x30] sm:$0xff] %vm1362, %v1234
      %1370 = vst.msk [vmem:[%s232 + $0x38] sm:$0xff] %vm1362, %v1239
      %1371 = vst.msk [vmem:[%s232 + $0x40] sm:$0xff] %vm1362, %v1244
      %1372 = vst.msk [vmem:[%s232 + $0x48] sm:$0xff] %vm1362, %v1249
      %1373 = vst.msk [vmem:[%s232 + $0x50] sm:$0xff] %vm1362, %v1254
      %1374 = vst.msk [vmem:[%s232 + $0x58] sm:$0xff] %vm1362, %v1259
      %1375 = vst.msk [vmem:[%s232 + $0x60] sm:$0xff] %vm1362, %v1264
      %1376 = vst.msk [vmem:[%s232 + $0x68] sm:$0xff] %vm1362, %v1269
      %1377 = vst.msk [vmem:[%s232 + $0x70] sm:$0xff] %vm1362, %v1274
      %1378 = vst.msk [vmem:[%s232 + $0x78] sm:$0xff] %vm1362, %v1279
      %1379 = vst.msk [vmem:[%s232 + $0x80] sm:$0xff] %vm1362, %v1284
      %1380 = vst.msk [vmem:[%s232 + $0x88] sm:$0xff] %vm1362, %v1289
      %1381 = vst.msk [vmem:[%s232 + $0x90] sm:$0xff] %vm1362, %v1294
      %1382 = vst.msk [vmem:[%s232 + $0x98] sm:$0xff] %vm1362, %v1299
      %1383 = vst.msk [vmem:[%s232 + $0xa0] sm:$0xff] %vm1362, %v1304
      %1384 = vst.msk [vmem:[%s232 + $0xa8] sm:$0xff] %vm1362, %v1309
      %1385 = vst.msk [vmem:[%s232 + $0xb0] sm:$0xff] %vm1362, %v1314
      %1386 = vst.msk [vmem:[%s232 + $0xb8] sm:$0xff] %vm1362, %v1319
      %1387 = vst.msk [vmem:[%s232 + $0xc0] sm:$0xff] %vm1362, %v1324
      %1388 = vst.msk [vmem:[%s232 + $0xc8] sm:$0xff] %vm1362, %v1329
      %1389 = vst.msk [vmem:[%s232 + $0xd0] sm:$0xff] %vm1362, %v1334
      %1390 = vst.msk [vmem:[%s232 + $0xd8] sm:$0xff] %vm1362, %v1339
      %1391 = vst.msk [vmem:[%s232 + $0xe0] sm:$0xff] %vm1362, %v1344
      %1392 = vst.msk [vmem:[%s232 + $0xe8] sm:$0xff] %vm1362, %v1349
      %1393 = vst.msk [vmem:[%s232 + $0xf0] sm:$0xff] %vm1362, %v1354
      %1394 = vst.msk [vmem:[%s232 + $0xf8] sm:$0xff] %vm1362, %v1359
      %s1395 = smul.u32 32, %s20
      %p1396 = scmp.lt.s32.totalorder %s19, 1
      %s1397 = scalar_select %p1396, %s19, 1
      %p1398 = scmp.lt.s32.totalorder %s1395, 31
      %s1399 = scalar_select %p1398, %s1395, 31
      %s1400 = smul.addr %s1397, 32
      %s1401 = sadd.s32 %s1399, %s1400
      %s1402 = smul.addr %s1401, 8
      %s1403 = scalar_lea.vmem %s2, %s1402
      %s1404 = smul.u32 32, %s20
      %p1405 = scmp.lt.s32.totalorder %s19, 1
      %s1406 = scalar_select %p1405, %s19, 1
      %p1407 = scmp.lt.s32.totalorder %s1404, 31
      %s1408 = scalar_select %p1407, %s1404, 31
      %s1409 = smul.addr %s1406, 32
      %s1410 = sadd.s32 %s1408, %s1409
      %s1411 = smul.addr %s1410, 8
      %s1412 = scalar_lea.vmem %s3, %s1411
      // Predicated region
      $region29: #{tpu_custom_call.1} parent=27 // pred_check
        %p1413 = pneg %p96
      $region30: #{tpu_custom_call.1} parent=27 // pred_check_branch
        %1415 = sbr.rel (%p1413) target = $region32
      $region31: #{tpu_custom_call.1} parent=27 // pred_region
        %s1416 = smul.u32 32, %s20
      $region32: #{tpu_custom_call.1} parent=27 // pred_fallthru
        _
      // Predicated region
      $region33: #{tpu_custom_call.1} parent=27 // pred_check
        %p1417 = pneg %p124
      $region34: #{tpu_custom_call.1} parent=27 // pred_check_branch
        %1419 = sbr.rel (%p1417) target = $region36
      $region35: #{tpu_custom_call.1} parent=27 // pred_region
        %s1420 = smul.u32 32, %s20
      $region36: #{tpu_custom_call.1} parent=27 // pred_fallthru
        _
    $region28: #{tpu_custom_call.1} parent=5 // pred_fallthru
      _
    %p1421 = scmp.le.s32.totalorder 2, %s10
    // Predicated region
    $region37: #{tpu_custom_call.1} parent=5 // pred_check
      %p1422 = pneg %p1421
    $region38: #{tpu_custom_call.1} parent=5 // pred_check_branch
      %1424 = sbr.rel (%p1422) target = $region40
    $region39: #{tpu_custom_call.1} parent=5 // pred_region
      %s1425 = ssub.s32 %s10, 2
      // Predicated region
      $region41: #{tpu_custom_call.1} parent=39 // pred_check
        %p1426 = pneg %p102
      $region42: #{tpu_custom_call.1} parent=39 // pred_check_branch
        %1428 = sbr.rel (%p1426) target = $region44
      $region43: #{tpu_custom_call.1} parent=39 // pred_region
        %s1429 = smul.u32 32, %s22
        %p1430 = scmp.lt.s32.totalorder %s21, 1
        %s1431 = scalar_select %p1430, %s21, 1
        %p1432 = scmp.lt.s32.totalorder %s1429, 31
        %s1433 = scalar_select %p1432, %s1429, 31
        %s1434 = smul.addr %s1431, 32
        %s1435 = sadd.s32 %s1433, %s1434
        %s1436 = smul.addr %s1435, 8
        %s1437 = scalar_lea.vmem %s2, %s1436
      $region44: #{tpu_custom_call.1} parent=39 // pred_fallthru
        _
      // Predicated region
      $region45: #{tpu_custom_call.1} parent=39 // pred_check
        %p1438 = pneg %p130
      $region46: #{tpu_custom_call.1} parent=39 // pred_check_branch
        %1440 = sbr.rel (%p1438) target = $region48
      $region47: #{tpu_custom_call.1} parent=39 // pred_region
        %s1441 = smul.u32 32, %s22
        %p1442 = scmp.lt.s32.totalorder %s21, 1
        %s1443 = scalar_select %p1442, %s21, 1
        %p1444 = scmp.lt.s32.totalorder %s1441, 31
        %s1445 = scalar_select %p1444, %s1441, 31
        %s1446 = smul.addr %s1443, 32
        %s1447 = sadd.s32 %s1445, %s1446
        %s1448 = smul.addr %s1447, 8
        %s1449 = scalar_lea.vmem %s3, %s1448
      $region48: #{tpu_custom_call.1} parent=39 // pred_fallthru
        _
    $region40: #{tpu_custom_call.1} parent=5 // pred_fallthru
      _
  $region6: #{tpu_custom_call.1} parent=0 // loop_footer
    %s14 = sadd.s32 1, %s10
  $region7: #{tpu_custom_call.1} parent=0 // loop_footer_branch
    %9 = sbr.rel target = $region3
  $region8: #{tpu_custom_call.1} parent=0 // loop_exit
    _

</llo_original>
